<compile_context>
chip_gen: v6e
topology: v6e:2x2x1
jax: 0.10.0
libtpu: 0.0.40
codegen_flags: <defaults>
</compile_context>

<pallas_src>
import functools

import jax
import jax.numpy as jnp
from jax.experimental import pallas as pl
from jax.experimental.pallas import tpu as pltpu

# ---------------------------------------------------------------------------
# Config (small shapes consistent with the module)
# ---------------------------------------------------------------------------
N_LAYERS = 2
IN_FEATURES = 32
LATENT = 16
BATCH = 8
N_INSTANCES = 4          # demo: number of independent encoder calls gridded
BN_EPS = 1e-5
MU_WEIGHT_STD = 0.001
MU_BIAS = 0.0
LOGVAR_WEIGHT_STD = 0.01
LOGVAR_BIAS = 0.0


# ---------------------------------------------------------------------------
# Pallas kernel: one grid step = full forward for one [B, F] instance.
# ---------------------------------------------------------------------------
def feature_encoder_kernel(x_ref, w_layers_ref, gamma_ref, beta_ref,
                           w_heads_ref, b_heads_ref, out_ref, *, n_layers):
    h = x_ref[...]                                            # [B, F] f32

    for i in range(n_layers):
        # Linear(F, F, bias=False): y = h @ W  (W stored [in, out]).
        h = jnp.dot(h, w_layers_ref[i], preferred_element_type=jnp.float32)

        # BatchNorm1d, training mode: batch statistics, biased variance.
        # var = E[h^2] - mean^2  -> both reductions issue back-to-back.
        mean = jnp.mean(h, axis=0, keepdims=True)             # [1, F]
        mean_sq = jnp.mean(h * h, axis=0, keepdims=True)      # [1, F]
        var = mean_sq - mean * mean

        # Fold gamma into the normalization scale ([1, F] op, ~free).
        scale = gamma_ref[i:i + 1, :] * jax.lax.rsqrt(var + BN_EPS)
        h = (h - mean) * scale + beta_ref[i:i + 1, :]

        # Swish: x * sigmoid(x).  lax.logistic -> EUP slot.
        h = h * jax.nn.sigmoid(h)

    # Fused mu/logvar heads: one matmul, one bias add, one 32-lane store.
    out = jnp.dot(h, w_heads_ref[...], preferred_element_type=jnp.float32)
    out_ref[...] = out + b_heads_ref[...]                     # [B, 2*LATENT]


# ---------------------------------------------------------------------------
# Wrappers
# ---------------------------------------------------------------------------
def feature_encoder_forward_batched(x_batched, params):
    """x_batched: [N, B, F] f32 — N independent encoder calls, gridded.

    Returns (mu, logvar), each [N, B, LATENT]. BatchNorm statistics are
    computed per instance over its own B rows (training-mode semantics of one
    module call per instance).
    """
    n, b, f = x_batched.shape
    two_lat = 2 * LATENT
    kernel = functools.partial(feature_encoder_kernel, n_layers=N_LAYERS)

    out = pl.pallas_call(
        kernel,
        out_shape=jax.ShapeDtypeStruct((n, b, two_lat), jnp.float32),
        grid_spec=pltpu.PrefetchScalarGridSpec(
            num_scalar_prefetch=0,
            grid=(n,),
            in_specs=[
                pl.BlockSpec((None, b, f), lambda i: (i, 0, 0)),      # x
                pl.BlockSpec((N_LAYERS, f, f), lambda i: (0, 0, 0)),  # w_layers
                pl.BlockSpec((N_LAYERS, f), lambda i: (0, 0)),        # gamma
                pl.BlockSpec((N_LAYERS, f), lambda i: (0, 0)),        # beta
                pl.BlockSpec((f, two_lat), lambda i: (0, 0)),         # w_heads
                pl.BlockSpec((1, two_lat), lambda i: (0, 0)),         # b_heads
            ],
            out_specs=pl.BlockSpec((None, b, two_lat), lambda i: (i, 0, 0)),
        ),
        compiler_params=pltpu.CompilerParams(
            dimension_semantics=("parallel",)),
    )(x_batched, params["w_layers"], params["gamma"], params["beta"],
      params["w_heads"], params["b_heads"])

    return out[..., :LATENT], out[..., LATENT:]


def feature_encoder_forward(x, params):
    """Module-equivalent forward for a single [B, F] input."""
    mu, logvar = feature_encoder_forward_batched(x[None], params)
    return mu[0], logvar[0]


# ---------------------------------------------------------------------------
# Deterministic parameter init (mirrors the module's __init__ semantics)
# ---------------------------------------------------------------------------
def make_params(key):
    keys = jax.random.split(key, N_LAYERS + 2)

    # Hidden MLP layers: Linear(F, F, bias=False); stored as [in, out] so the
    # kernel computes x @ W.
    w_layers = jnp.stack([
        jax.random.normal(keys[i], (IN_FEATURES, IN_FEATURES), jnp.float32) * 0.1
        for i in range(N_LAYERS)
    ])

    # BatchNorm1d affine params at init: gamma=1, beta=0.  Stored [n_layers, F].
    gamma = jnp.ones((N_LAYERS, IN_FEATURES), jnp.float32)
    beta = jnp.zeros((N_LAYERS, IN_FEATURES), jnp.float32)

    # Heads, fused along the output dim: [:, :LATENT] = mu, [:, LATENT:] = logvar.
    w_mu = (jax.random.normal(keys[N_LAYERS], (IN_FEATURES, LATENT), jnp.float32)
            * MU_WEIGHT_STD)
    w_lv = (jax.random.normal(keys[N_LAYERS + 1], (IN_FEATURES, LATENT),
                              jnp.float32) * LOGVAR_WEIGHT_STD)
    w_heads = jnp.concatenate([w_mu, w_lv], axis=1)            # [F, 2*LATENT]
    b_heads = jnp.concatenate(
        [jnp.full((1, LATENT), MU_BIAS, jnp.float32),
         jnp.full((1, LATENT), LOGVAR_BIAS, jnp.float32)], axis=1)

    return dict(w_layers=w_layers, gamma=gamma, beta=beta,
                w_heads=w_heads, b_heads=b_heads)


# ---------------------------------------------------------------------------
# Pure-JAX reference for a sanity check (one [B, F] instance)
# ---------------------------------------------------------------------------
def reference_forward(x, params):
    h = x
    for i in range(N_LAYERS):
        h = h @ params["w_layers"][i]
        mean = jnp.mean(h, axis=0, keepdims=True)
        var = jnp.mean((h - mean) ** 2, axis=0, keepdims=True)
        h = (h - mean) / jnp.sqrt(var + BN_EPS)
        h = h * params["gamma"][i] + params["beta"][i]
        h = h * jax.nn.sigmoid(h)
    out = h @ params["w_heads"] + params["b_heads"]
    return out[:, :LATENT], out[:, LATENT:]


if __name__ == "__main__":
    key = jax.random.PRNGKey(0)
    k_x, k_p = jax.random.split(key)
    params = make_params(k_p)

    # Batched path: grid over N_INSTANCES independent encoder calls.
    xb = jax.random.normal(k_x, (N_INSTANCES, BATCH, IN_FEATURES), jnp.float32)
    mu_b, lv_b = feature_encoder_forward_batched(xb, params)
    mu_b = jax.block_until_ready(mu_b)
    lv_b = jax.block_until_ready(lv_b)
    assert mu_b.shape == (N_INSTANCES, BATCH, LATENT)
    assert lv_b.shape == (N_INSTANCES, BATCH, LATENT)
    for i in range(N_INSTANCES):
        mu_ref, lv_ref = reference_forward(xb[i], params)
        assert jnp.allclose(mu_b[i], mu_ref, atol=1e-5, rtol=1e-5)
        assert jnp.allclose(lv_b[i], lv_ref, atol=1e-5, rtol=1e-5)

    # Single-call path (module-equivalent forward for one [B, F] input).
    x = xb[0]
    mu, logvar = feature_encoder_forward(x, params)
    mu = jax.block_until_ready(mu)
    logvar = jax.block_until_ready(logvar)
    mu_ref, lv_ref = reference_forward(x, params)
    assert mu.shape == (BATCH, LATENT) and logvar.shape == (BATCH, LATENT)
    assert jnp.allclose(mu, mu_ref, atol=1e-5, rtol=1e-5)
    assert jnp.allclose(logvar, lv_ref, atol=1e-5, rtol=1e-5)

    # TODO(synk): BatchNorm1d eval-mode path (running_mean/running_var) and
    # running-stat updates are not implemented; training-mode batch stats only.
    print("KERNEL_OK")
</pallas_src>

<mosaic_0001>
module attributes {stable_mosaic.version = 11 : i64} {
  func.func @feature_encoder_kernel(%arg0: i32, %arg1: memref<1x8x32xf32, #tpu.memory_space<vmem>>, %arg2: memref<2x32x32xf32, #tpu.memory_space<vmem>>, %arg3: memref<2x32xf32, #tpu.memory_space<vmem>>, %arg4: memref<2x32xf32, #tpu.memory_space<vmem>>, %arg5: memref<32x32xf32, #tpu.memory_space<vmem>>, %arg6: memref<1x32xf32, #tpu.memory_space<vmem>>, %arg7: memref<1x8x32xf32, #tpu.memory_space<vmem>>) attributes {dimension_semantics = [#tpu.dimension_semantics<parallel>], iteration_bounds = array<i64: 4>, scalar_prefetch = 0 : i64, scratch_operands = 0 : i64, tpu.core_type = #tpu.core_type<tc>, window_params = [{transform_indices = @transform_0, window_bounds = array<i64: 1, 8, 32>}, {pipeline_mode = #tpu.pipeline_mode<synchronous>, transform_indices = @transform_1, window_bounds = array<i64: 2, 32, 32>}, {pipeline_mode = #tpu.pipeline_mode<synchronous>, transform_indices = @transform_2, window_bounds = array<i64: 2, 32>}, {pipeline_mode = #tpu.pipeline_mode<synchronous>, transform_indices = @transform_3, window_bounds = array<i64: 2, 32>}, {pipeline_mode = #tpu.pipeline_mode<synchronous>, transform_indices = @transform_4, window_bounds = array<i64: 32, 32>}, {pipeline_mode = #tpu.pipeline_mode<synchronous>, transform_indices = @transform_5, window_bounds = array<i64: 1, 32>}, {transform_indices = @transform_6, window_bounds = array<i64: 1, 8, 32>}]} {
    %c0 = arith.constant 0 : index
    %c0_0 = arith.constant 0 : index
    %c0_1 = arith.constant 0 : index
    %0 = vector.load %arg1[%c0, %c0_0, %c0_1] : memref<1x8x32xf32, #tpu.memory_space<vmem>>, vector<1x8x32xf32>
    %1 = vector.shape_cast %0 : vector<1x8x32xf32> to vector<8x32xf32>
    %c0_2 = arith.constant 0 : index
    %c0_3 = arith.constant 0 : index
    %c0_4 = arith.constant 0 : index
    %2 = vector.load %arg2[%c0_2, %c0_3, %c0_4] : memref<2x32x32xf32, #tpu.memory_space<vmem>>, vector<1x32x32xf32>
    %3 = vector.shape_cast %2 : vector<1x32x32xf32> to vector<32x32xf32>
    %cst = arith.constant dense<0.000000e+00> : vector<8x32xf32>
    %4 = tpu.matmul %1, %3, %cst {dimension_numbers = #tpu.dot_dimension_numbers<[1], [0], [0], [1], [0, 0, 1, 1], [], []>} : vector<8x32xf32>, vector<32x32xf32>, vector<8x32xf32> -> vector<8x32xf32>
    %cst_5 = arith.constant dense<0.000000e+00> : vector<32xf32>
    %5 = vector.multi_reduction <add>, %4, %cst_5 [0] : vector<8x32xf32> to vector<32xf32>
    %6 = vector.shape_cast %5 : vector<32xf32> to vector<1x32xf32>
    %cst_6 = arith.constant 8.000000e+00 : f32
    %7 = vector.broadcast %cst_6 : f32 to vector<1x32xf32>
    %8 = arith.divf %6, %7 : vector<1x32xf32>
    %9 = arith.mulf %4, %4 : vector<8x32xf32>
    %cst_7 = arith.constant dense<0.000000e+00> : vector<32xf32>
    %10 = vector.multi_reduction <add>, %9, %cst_7 [0] : vector<8x32xf32> to vector<32xf32>
    %11 = vector.shape_cast %10 : vector<32xf32> to vector<1x32xf32>
    %cst_8 = arith.constant 8.000000e+00 : f32
    %12 = vector.broadcast %cst_8 : f32 to vector<1x32xf32>
    %13 = arith.divf %11, %12 : vector<1x32xf32>
    %14 = arith.mulf %8, %8 : vector<1x32xf32>
    %15 = arith.subf %13, %14 : vector<1x32xf32>
    %c0_9 = arith.constant 0 : index
    %c0_10 = arith.constant 0 : index
    %16 = vector.load %arg3[%c0_9, %c0_10] : memref<2x32xf32, #tpu.memory_space<vmem>>, vector<1x32xf32>
    %cst_11 = arith.constant 9.99999974E-6 : f32
    %17 = vector.broadcast %cst_11 : f32 to vector<1x32xf32>
    %18 = arith.addf %15, %17 : vector<1x32xf32>
    %19 = math.rsqrt %18 : vector<1x32xf32>
    %20 = arith.mulf %16, %19 : vector<1x32xf32>
    %21 = vector.broadcast %8 : vector<1x32xf32> to vector<8x32xf32>
    %22 = arith.subf %4, %21 : vector<8x32xf32>
    %23 = vector.broadcast %20 : vector<1x32xf32> to vector<8x32xf32>
    %24 = arith.mulf %22, %23 : vector<8x32xf32>
    %c0_12 = arith.constant 0 : index
    %c0_13 = arith.constant 0 : index
    %25 = vector.load %arg4[%c0_12, %c0_13] : memref<2x32xf32, #tpu.memory_space<vmem>>, vector<1x32xf32>
    %26 = vector.broadcast %25 : vector<1x32xf32> to vector<8x32xf32>
    %27 = arith.addf %24, %26 : vector<8x32xf32>
    %28 = arith.negf %27 : vector<8x32xf32>
    %29 = math.exp %28 : vector<8x32xf32>
    %cst_14 = arith.constant 1.000000e+00 : f32
    %30 = vector.broadcast %cst_14 : f32 to vector<8x32xf32>
    %31 = arith.addf %30, %29 : vector<8x32xf32>
    %32 = arith.divf %30, %31 : vector<8x32xf32>
    %33 = arith.mulf %27, %32 : vector<8x32xf32>
    %c1 = arith.constant 1 : index
    %c0_15 = arith.constant 0 : index
    %c0_16 = arith.constant 0 : index
    %34 = vector.load %arg2[%c1, %c0_15, %c0_16] : memref<2x32x32xf32, #tpu.memory_space<vmem>>, vector<1x32x32xf32>
    %35 = vector.shape_cast %34 : vector<1x32x32xf32> to vector<32x32xf32>
    %cst_17 = arith.constant dense<0.000000e+00> : vector<8x32xf32>
    %36 = tpu.matmul %33, %35, %cst_17 {dimension_numbers = #tpu.dot_dimension_numbers<[1], [0], [0], [1], [0, 0, 1, 1], [], []>} : vector<8x32xf32>, vector<32x32xf32>, vector<8x32xf32> -> vector<8x32xf32>
    %cst_18 = arith.constant dense<0.000000e+00> : vector<32xf32>
    %37 = vector.multi_reduction <add>, %36, %cst_18 [0] : vector<8x32xf32> to vector<32xf32>
    %38 = vector.shape_cast %37 : vector<32xf32> to vector<1x32xf32>
    %cst_19 = arith.constant 8.000000e+00 : f32
    %39 = vector.broadcast %cst_19 : f32 to vector<1x32xf32>
    %40 = arith.divf %38, %39 : vector<1x32xf32>
    %41 = arith.mulf %36, %36 : vector<8x32xf32>
    %cst_20 = arith.constant dense<0.000000e+00> : vector<32xf32>
    %42 = vector.multi_reduction <add>, %41, %cst_20 [0] : vector<8x32xf32> to vector<32xf32>
    %43 = vector.shape_cast %42 : vector<32xf32> to vector<1x32xf32>
    %cst_21 = arith.constant 8.000000e+00 : f32
    %44 = vector.broadcast %cst_21 : f32 to vector<1x32xf32>
    %45 = arith.divf %43, %44 : vector<1x32xf32>
    %46 = arith.mulf %40, %40 : vector<1x32xf32>
    %47 = arith.subf %45, %46 : vector<1x32xf32>
    %c1_22 = arith.constant 1 : index
    %c0_23 = arith.constant 0 : index
    %48 = vector.load %arg3[%c1_22, %c0_23] : memref<2x32xf32, #tpu.memory_space<vmem>>, vector<1x32xf32>
    %cst_24 = arith.constant 9.99999974E-6 : f32
    %49 = vector.broadcast %cst_24 : f32 to vector<1x32xf32>
    %50 = arith.addf %47, %49 : vector<1x32xf32>
    %51 = math.rsqrt %50 : vector<1x32xf32>
    %52 = arith.mulf %48, %51 : vector<1x32xf32>
    %53 = vector.broadcast %40 : vector<1x32xf32> to vector<8x32xf32>
    %54 = arith.subf %36, %53 : vector<8x32xf32>
    %55 = vector.broadcast %52 : vector<1x32xf32> to vector<8x32xf32>
    %56 = arith.mulf %54, %55 : vector<8x32xf32>
    %c1_25 = arith.constant 1 : index
    %c0_26 = arith.constant 0 : index
    %57 = vector.load %arg4[%c1_25, %c0_26] : memref<2x32xf32, #tpu.memory_space<vmem>>, vector<1x32xf32>
    %58 = vector.broadcast %57 : vector<1x32xf32> to vector<8x32xf32>
    %59 = arith.addf %56, %58 : vector<8x32xf32>
    %60 = arith.negf %59 : vector<8x32xf32>
    %61 = math.exp %60 : vector<8x32xf32>
    %cst_27 = arith.constant 1.000000e+00 : f32
    %62 = vector.broadcast %cst_27 : f32 to vector<8x32xf32>
    %63 = arith.addf %62, %61 : vector<8x32xf32>
    %64 = arith.divf %62, %63 : vector<8x32xf32>
    %65 = arith.mulf %59, %64 : vector<8x32xf32>
    %c0_28 = arith.constant 0 : index
    %c0_29 = arith.constant 0 : index
    %66 = vector.load %arg5[%c0_28, %c0_29] : memref<32x32xf32, #tpu.memory_space<vmem>>, vector<32x32xf32>
    %cst_30 = arith.constant dense<0.000000e+00> : vector<8x32xf32>
    %67 = tpu.matmul %65, %66, %cst_30 {dimension_numbers = #tpu.dot_dimension_numbers<[1], [0], [0], [1], [0, 0, 1, 1], [], []>} : vector<8x32xf32>, vector<32x32xf32>, vector<8x32xf32> -> vector<8x32xf32>
    %c0_31 = arith.constant 0 : index
    %c0_32 = arith.constant 0 : index
    %68 = vector.load %arg6[%c0_31, %c0_32] : memref<1x32xf32, #tpu.memory_space<vmem>>, vector<1x32xf32>
    %69 = vector.broadcast %68 : vector<1x32xf32> to vector<8x32xf32>
    %70 = arith.addf %67, %69 : vector<8x32xf32>
    %c0_33 = arith.constant 0 : index
    %c0_34 = arith.constant 0 : index
    %c0_35 = arith.constant 0 : index
    %71 = vector.load %arg7[%c0_33, %c0_34, %c0_35] : memref<1x8x32xf32, #tpu.memory_space<vmem>>, vector<1x8x32xf32>
    %72 = vector.shape_cast %71 : vector<1x8x32xf32> to vector<8x32xf32>
    %73 = vector.shape_cast %70 : vector<8x32xf32> to vector<1x8x32xf32>
    tpu.vector_store %arg7[%c0_33, %c0_34, %c0_35], %73 {strides = array<i32>} : memref<1x8x32xf32, #tpu.memory_space<vmem>>, vector<1x8x32xf32>,
    return
  }
  func.func @transform_0(%arg0: i32) -> (i32, i32, i32) {
    %c0_i32 = arith.constant 0 : i32
    %c0_i32_0 = arith.constant 0 : i32
    %c0_i32_1 = arith.constant 0 : i32
    return %arg0, %c0_i32, %c0_i32_0 : i32, i32, i32
  }
  func.func @transform_1(%arg0: i32) -> (i32, i32, i32) {
    %c0_i32 = arith.constant 0 : i32
    %c0_i32_0 = arith.constant 0 : i32
    %c0_i32_1 = arith.constant 0 : i32
    %c0_i32_2 = arith.constant 0 : i32
    return %c0_i32, %c0_i32_0, %c0_i32_1 : i32, i32, i32
  }
  func.func @transform_2(%arg0: i32) -> (i32, i32) {
    %c0_i32 = arith.constant 0 : i32
    %c0_i32_0 = arith.constant 0 : i32
    %c0_i32_1 = arith.constant 0 : i32
    return %c0_i32, %c0_i32_0 : i32, i32
  }
  func.func @transform_3(%arg0: i32) -> (i32, i32) {
    %c0_i32 = arith.constant 0 : i32
    %c0_i32_0 = arith.constant 0 : i32
    %c0_i32_1 = arith.constant 0 : i32
    return %c0_i32, %c0_i32_0 : i32, i32
  }
  func.func @transform_4(%arg0: i32) -> (i32, i32) {
    %c0_i32 = arith.constant 0 : i32
    %c0_i32_0 = arith.constant 0 : i32
    %c0_i32_1 = arith.constant 0 : i32
    return %c0_i32, %c0_i32_0 : i32, i32
  }
  func.func @transform_5(%arg0: i32) -> (i32, i32) {
    %c0_i32 = arith.constant 0 : i32
    %c0_i32_0 = arith.constant 0 : i32
    %c0_i32_1 = arith.constant 0 : i32
    return %c0_i32, %c0_i32_0 : i32, i32
  }
  func.func @transform_6(%arg0: i32) -> (i32, i32, i32) {
    %c0_i32 = arith.constant 0 : i32
    %c0_i32_0 = arith.constant 0 : i32
    %c0_i32_1 = arith.constant 0 : i32
    return %arg0, %c0_i32, %c0_i32_0 : i32, i32, i32
  }
}

</mosaic_0001>

<llo_original>
// kernel: tpu_custom_call.1
$region0: #{tpu_custom_call.1}
  #allocation0 [shape = 'u32[]', space=smem, size = 0x4, offset = 0x4, fixed_abs, tag = 'smem constant byte address 0x4 - core index']
  #allocation1 [shape = 'u32[144,128]{1,0:T(1,128)}', space=vmem, size = 0x12000, scoped, tag = 'internal scratch']
  %s0 = inlined_call_operand.hbm [shape: f32[4,8,32], index: 0, kind: input, shape index: {}]
  %s1 = inlined_call_operand.hbm [shape: f32[2,32,32], index: 1, kind: input, shape index: {}]
  %s2 = inlined_call_operand.vmem [shape: f32[2,32], index: 2, kind: input, shape index: {}]
  %s3 = inlined_call_operand.vmem [shape: f32[2,32], index: 3, kind: input, shape index: {}]
  %s4 = inlined_call_operand.hbm [shape: f32[32,32], index: 4, kind: input, shape index: {}]
  %s5 = inlined_call_operand.vmem [shape: f32[1,32], index: 5, kind: input, shape index: {}]
  %s6 = inlined_call_operand.hbm [shape: f32[4,8,32], index: 6, kind: output, shape index: {}]
  %s7 = sld [smem:[#allocation0]]
  $region69: #{tpu_custom_call.1} parent=0
    _
  %s9 = ssub.s32 1, %s7
  %s10 = scalar_select 0, %s9, %s7
  $region1: #{tpu_custom_call.1} parent=0
    #allocation2 [shape = 'u8[8192]{0}', space=vmem, size = 0x2000, scoped, tag = 'input window, operand 0']
    #allocation3 [shape = 's32[2]{0}', space=sflag, size = 0x8, scoped, tag = 'scoped memory for tpu_custom_call.1']
    #allocation4 [shape = 's32[2]{0}', space=sflag, size = 0x8, scoped, tag = 'scoped memory for tpu_custom_call.1']
    #allocation5 [shape = 'u8[32768]{0}', space=vmem, size = 0x8000, scoped, tag = 'input window, operand 1, single buffered']
    #allocation6 [shape = 's32[1]{0}', space=sflag, size = 0x4, scoped, tag = 'scoped memory for tpu_custom_call.1']
    #allocation7 [shape = 'u8[16384]{0}', space=vmem, size = 0x4000, scoped, tag = 'input window, operand 4, single buffered']
    #allocation8 [shape = 'u8[8192]{0}', space=vmem, size = 0x2000, scoped, tag = 'output window, operand 0']
    %11 = vsyncpa [#allocation3], 0
    %s12 = scalar_lea.sflag [#allocation3], 1
    %13 = vsyncpa %s12, 0
    %14 = vsyncpa [#allocation6], 0
    %15 = vsyncpa [#allocation4], 0
    %s16 = scalar_lea.sflag [#allocation4], 1
    %17 = vsyncpa %s16, 0
    loop: start=0, step=1, limit=6
    $region2: #{tpu_custom_call.1} parent=1 // loop_pre_header
      _
    $region3: #{tpu_custom_call.1} parent=1 // loop_header
      %s19 = sphi 0, %s23
      %p20 = scmp.ge.s32.totalorder %s19, 6
      %s29 = sphi 0, %s31
      %s32 = sphi 0, %s29
      %s33 = sphi 0, %s32
      %s49 = sphi 0, %s33
      %s53 = sphi 0, %s53
      %s55 = sphi 0, %s53
      %s56 = sphi 0, %s55
      %s70 = sphi 0, %s56
      %s74 = sphi 0, %s74
      %s76 = sphi 0, %s74
      %s77 = sphi 0, %s76
      %s91 = sphi 0, %s77
      %s95 = sphi 0, %s95
      %s97 = sphi 0, %s95
      %s98 = sphi 0, %s97
      %s112 = sphi 0, %s98
      %s116 = sphi 0, %s116
      %s118 = sphi 0, %s116
      %s119 = sphi 0, %s118
      %s133 = sphi 0, %s119
      %s137 = sphi 0, %s137
      %s139 = sphi 0, %s137
      %s140 = sphi 0, %s139
      %s154 = sphi 0, %s140
      %s160 = sphi 0, %s162
      %s163 = sphi 0, %s160
      %s164 = sphi 0, %s163
      %s180 = sphi 0, %s164
    $region4: #{tpu_custom_call.1} parent=1 // loop_header_branch
      %22 = sbr.rel (%p20) target = $region8
    $region5: #{tpu_custom_call.1} parent=1 // loop_body
      %s24 = ssub.s32 %s19, 1
      %s25 = ssub.s32 %s19, 2
      %s26 = sadd.s32 %s19, 1
      %s27 = ssub.s32 %s19, %s26
      %p28 = scmp.eq.s32.totalorder %s27, 0
      %s30 = sadd.s32 %s29, 1
      %s31 = scalar_select %p28, %s29, %s30
      %p34 = pneg %p28
      %p35 = scmp.eq.s32.totalorder %s19, 3
      %p36 = por %p34, %p35
      %p37 = scmp.ne.s32.totalorder %s29, %s32
      %p38 = scmp.eq.s32.totalorder %s19, 0
      %p39 = por %p37, %p38
      %p40 = scmp.ne.s32.totalorder %s29, %s32
      %p41 = scmp.eq.s32.totalorder %s24, 3
      %p42 = por %p40, %p41
      %p43 = scmp.ne.s32.totalorder %s32, %s33
      %p44 = scmp.eq.s32.totalorder %s24, 0
      %p45 = por %p43, %p44
      %p46 = scmp.ne.s32.totalorder %s32, %s33
      %p47 = scmp.eq.s32.totalorder %s25, 3
      %p48 = por %p46, %p47
      %p50 = scmp.ne.s32.totalorder %s33, %s49
      %p51 = scmp.eq.s32.totalorder %s25, 0
      %p52 = por %p50, %p51
      %s54 = sadd.s32 %s53, 1
      %p57 = scmp.eq.s32.totalorder %s19, 3
      %p58 = scmp.ne.s32.totalorder %s53, %s55
      %p59 = scmp.eq.s32.totalorder %s19, 0
      %p60 = por %p58, %p59
      %p61 = scmp.ne.s32.totalorder %s53, %s55
      %p62 = scmp.eq.s32.totalorder %s24, 3
      %p63 = por %p61, %p62
      %p64 = scmp.ne.s32.totalorder %s55, %s56
      %p65 = scmp.eq.s32.totalorder %s24, 0
      %p66 = por %p64, %p65
      %p67 = scmp.ne.s32.totalorder %s55, %s56
      %p68 = scmp.eq.s32.totalorder %s25, 3
      %p69 = por %p67, %p68
      %p71 = scmp.ne.s32.totalorder %s56, %s70
      %p72 = scmp.eq.s32.totalorder %s25, 0
      %p73 = por %p71, %p72
      %s75 = sadd.s32 %s74, 1
      %p78 = scmp.eq.s32.totalorder %s19, 3
      %p79 = scmp.ne.s32.totalorder %s74, %s76
      %p80 = scmp.eq.s32.totalorder %s19, 0
      %p81 = por %p79, %p80
      %p82 = scmp.ne.s32.totalorder %s74, %s76
      %p83 = scmp.eq.s32.totalorder %s24, 3
      %p84 = por %p82, %p83
      %p85 = scmp.ne.s32.totalorder %s76, %s77
      %p86 = scmp.eq.s32.totalorder %s24, 0
      %p87 = por %p85, %p86
      %p88 = scmp.ne.s32.totalorder %s76, %s77
      %p89 = scmp.eq.s32.totalorder %s25, 3
      %p90 = por %p88, %p89
      %p92 = scmp.ne.s32.totalorder %s77, %s91
      %p93 = scmp.eq.s32.totalorder %s25, 0
      %p94 = por %p92, %p93
      %s96 = sadd.s32 %s95, 1
      %p99 = scmp.eq.s32.totalorder %s19, 3
      %p100 = scmp.ne.s32.totalorder %s95, %s97
      %p101 = scmp.eq.s32.totalorder %s19, 0
      %p102 = por %p100, %p101
      %p103 = scmp.ne.s32.totalorder %s95, %s97
      %p104 = scmp.eq.s32.totalorder %s24, 3
      %p105 = por %p103, %p104
      %p106 = scmp.ne.s32.totalorder %s97, %s98
      %p107 = scmp.eq.s32.totalorder %s24, 0
      %p108 = por %p106, %p107
      %p109 = scmp.ne.s32.totalorder %s97, %s98
      %p110 = scmp.eq.s32.totalorder %s25, 3
      %p111 = por %p109, %p110
      %p113 = scmp.ne.s32.totalorder %s98, %s112
      %p114 = scmp.eq.s32.totalorder %s25, 0
      %p115 = por %p113, %p114
      %s117 = sadd.s32 %s116, 1
      %p120 = scmp.eq.s32.totalorder %s19, 3
      %p121 = scmp.ne.s32.totalorder %s116, %s118
      %p122 = scmp.eq.s32.totalorder %s19, 0
      %p123 = por %p121, %p122
      %p124 = scmp.ne.s32.totalorder %s116, %s118
      %p125 = scmp.eq.s32.totalorder %s24, 3
      %p126 = por %p124, %p125
      %p127 = scmp.ne.s32.totalorder %s118, %s119
      %p128 = scmp.eq.s32.totalorder %s24, 0
      %p129 = por %p127, %p128
      %p130 = scmp.ne.s32.totalorder %s118, %s119
      %p131 = scmp.eq.s32.totalorder %s25, 3
      %p132 = por %p130, %p131
      %p134 = scmp.ne.s32.totalorder %s119, %s133
      %p135 = scmp.eq.s32.totalorder %s25, 0
      %p136 = por %p134, %p135
      %s138 = sadd.s32 %s137, 1
      %p141 = scmp.eq.s32.totalorder %s19, 3
      %p142 = scmp.ne.s32.totalorder %s137, %s139
      %p143 = scmp.eq.s32.totalorder %s19, 0
      %p144 = por %p142, %p143
      %p145 = scmp.ne.s32.totalorder %s137, %s139
      %p146 = scmp.eq.s32.totalorder %s24, 3
      %p147 = por %p145, %p146
      %p148 = scmp.ne.s32.totalorder %s139, %s140
      %p149 = scmp.eq.s32.totalorder %s24, 0
      %p150 = por %p148, %p149
      %p151 = scmp.ne.s32.totalorder %s139, %s140
      %p152 = scmp.eq.s32.totalorder %s25, 3
      %p153 = por %p151, %p152
      %p155 = scmp.ne.s32.totalorder %s140, %s154
      %p156 = scmp.eq.s32.totalorder %s25, 0
      %p157 = por %p155, %p156
      %s158 = ssub.s32 %s19, %s26
      %p159 = scmp.eq.s32.totalorder %s158, 0
      %s161 = sadd.s32 %s160, 1
      %s162 = scalar_select %p159, %s160, %s161
      %p165 = pneg %p159
      %p166 = scmp.eq.s32.totalorder %s19, 3
      %p167 = por %p165, %p166
      %p168 = scmp.ne.s32.totalorder %s160, %s163
      %p169 = scmp.eq.s32.totalorder %s19, 0
      %p170 = por %p168, %p169
      %p171 = scmp.ne.s32.totalorder %s160, %s163
      %p172 = scmp.eq.s32.totalorder %s24, 3
      %p173 = por %p171, %p172
      %p174 = scmp.ne.s32.totalorder %s163, %s164
      %p175 = scmp.eq.s32.totalorder %s24, 0
      %p176 = por %p174, %p175
      %p177 = scmp.ne.s32.totalorder %s163, %s164
      %p178 = scmp.eq.s32.totalorder %s25, 3
      %p179 = por %p177, %p178
      %p181 = scmp.ne.s32.totalorder %s164, %s180
      %p182 = scmp.eq.s32.totalorder %s25, 0
      %p183 = por %p181, %p182
      %p184 = scmp.le.s32.totalorder 1, %s19
      %p185 = scmp.lt.s32.totalorder %s19, 5
      %p186 = pnand %p184, %p185
      %p187 = pneg %p186
      // Predicated region
      $region9: #{tpu_custom_call.1} parent=5 // pred_check
        _
      $region10: #{tpu_custom_call.1} parent=5 // pred_check_branch
        %189 = sbr.rel (%p186) target = $region12
      $region11: #{tpu_custom_call.1} parent=5 // pred_region
        %s190 = ssub.s32 %s19, 1
        // Predicated region
        $region13: #{tpu_custom_call.1} parent=11 // pred_check
          %p191 = pneg %p66
        $region14: #{tpu_custom_call.1} parent=11 // pred_check_branch
          %193 = sbr.rel (%p191) target = $region16
        $region15: #{tpu_custom_call.1} parent=11 // pred_region
          %s195 = ssub.s32 1024, 1024
          %196 = vsyncadd [#allocation6], %s195
          %s197 = sshll.u32 [#allocation5], 4
          %s198 = int_to_ptr.vmem [resolvable:$true] %s197
          %203 = dma.hbm_to_vmem [thread:$0]  %s1, 1024, %s198, [#allocation6], 128, 128, 8
        $region16: #{tpu_custom_call.1} parent=11 // pred_fallthru
          _
        // Predicated region
        $region17: #{tpu_custom_call.1} parent=11 // pred_check
          %p204 = pneg %p87
        $region18: #{tpu_custom_call.1} parent=11 // pred_check_branch
          %206 = sbr.rel (%p204) target = $region20
        $region19: #{tpu_custom_call.1} parent=11 // pred_region
          _
        $region20: #{tpu_custom_call.1} parent=11 // pred_fallthru
          _
        // Predicated region
        $region21: #{tpu_custom_call.1} parent=11 // pred_check
          %p207 = pneg %p108
        $region22: #{tpu_custom_call.1} parent=11 // pred_check_branch
          %209 = sbr.rel (%p207) target = $region24
        $region23: #{tpu_custom_call.1} parent=11 // pred_region
          _
        $region24: #{tpu_custom_call.1} parent=11 // pred_fallthru
          _
        // Predicated region
        $region25: #{tpu_custom_call.1} parent=11 // pred_check
          %p210 = pneg %p129
        $region26: #{tpu_custom_call.1} parent=11 // pred_check_branch
          %212 = sbr.rel (%p210) target = $region28
        $region27: #{tpu_custom_call.1} parent=11 // pred_region
          %s214 = ssub.s32 512, 512
          %215 = vsyncadd [#allocation6], %s214
          %s216 = sshll.u32 [#allocation7], 4
          %s217 = int_to_ptr.vmem [resolvable:$true] %s216
          %222 = dma.hbm_to_vmem [thread:$0]  %s4, 512, %s217, [#allocation6], 128, 128, 8
        $region28: #{tpu_custom_call.1} parent=11 // pred_fallthru
          _
        // Predicated region
        $region29: #{tpu_custom_call.1} parent=11 // pred_check
          %p223 = pneg %p150
        $region30: #{tpu_custom_call.1} parent=11 // pred_check_branch
          %225 = sbr.rel (%p223) target = $region32
        $region31: #{tpu_custom_call.1} parent=11 // pred_region
          _
        $region32: #{tpu_custom_call.1} parent=11 // pred_fallthru
          _
      $region12: #{tpu_custom_call.1} parent=5 // pred_fallthru
        _
      %p226 = scmp.lt.s32.totalorder %s19, 4
      // Predicated region
      $region33: #{tpu_custom_call.1} parent=5 // pred_check
        %p227 = pneg %p226
      $region34: #{tpu_custom_call.1} parent=5 // pred_check_branch
        %229 = sbr.rel (%p227) target = $region36
      $region35: #{tpu_custom_call.1} parent=5 // pred_region
        // Predicated region
        $region37: #{tpu_custom_call.1} parent=35 // pred_check
          %p230 = pneg %p39
        $region38: #{tpu_custom_call.1} parent=35 // pred_check_branch
          %232 = sbr.rel (%p230) target = $region40
        $region39: #{tpu_custom_call.1} parent=35 // pred_region
          %s233 = sand.u32 %s29, 1
          %s234 = scalar_lea.sflag [#allocation3], %s233
          %s235 = sand.u32 %s29, 1
          %s236 = smul.addr %s235, 8
          %s237 = scalar_lea.vmem [#allocation2], %s236
          %s239 = ssub.s32 128, 128
          %240 = vsyncadd %s234, %s239
          %s241 = smul.addr %s19, 128
          %s242 = scalar_lea.hbm %s0, %s241
          %s244 = sshll.u32 %s237, 4
          %s245 = int_to_ptr.vmem [resolvable:$true] %s244
          %247 = dma.hbm_to_vmem [thread:$0]  %s242, 128, %s245, %s234
        $region40: #{tpu_custom_call.1} parent=35 // pred_fallthru
          _
      $region36: #{tpu_custom_call.1} parent=5 // pred_fallthru
        _
      %p248 = scmp.le.s32.totalorder 1, %s19
      %p249 = scmp.lt.s32.totalorder %s19, 5
      %p250 = pnand %p248, %p249
      %p251 = pneg %p250
      // Predicated region
      $region41: #{tpu_custom_call.1} parent=5 // pred_check
        _
      $region42: #{tpu_custom_call.1} parent=5 // pred_check_branch
        %253 = sbr.rel (%p250) target = $region44
      $region43: #{tpu_custom_call.1} parent=5 // pred_region
        %s254 = ssub.s32 %s19, 1
        %s255 = sand.u32 %s32, 1
        %s256 = scalar_lea.sflag [#allocation3], %s255
        %s257 = sand.u32 %s32, 1
        %s258 = smul.addr %s257, 8
        %s259 = scalar_lea.vmem [#allocation2], %s258
        // Predicated region
        $region45: #{tpu_custom_call.1} parent=43 // pred_check
          %p260 = pneg %p45
        $region46: #{tpu_custom_call.1} parent=43 // pred_check_branch
          %262 = sbr.rel (%p260) target = $region48
        $region47: #{tpu_custom_call.1} parent=43 // pred_region
          %263 = dma.done %s256, 128
        $region48: #{tpu_custom_call.1} parent=43 // pred_fallthru
          _
        // Predicated region
        $region49: #{tpu_custom_call.1} parent=43 // pred_check
          %p264 = pneg %p66
        $region50: #{tpu_custom_call.1} parent=43 // pred_check_branch
          %266 = sbr.rel (%p264) target = $region52
        $region51: #{tpu_custom_call.1} parent=43 // pred_region
          %267 = dma.done [#allocation6], 1024
        $region52: #{tpu_custom_call.1} parent=43 // pred_fallthru
          _
        // Predicated region
        $region53: #{tpu_custom_call.1} parent=43 // pred_check
          %p268 = pneg %p129
        $region54: #{tpu_custom_call.1} parent=43 // pred_check_branch
          %270 = sbr.rel (%p268) target = $region56
        $region55: #{tpu_custom_call.1} parent=43 // pred_region
          %271 = dma.done [#allocation6], 512
        $region56: #{tpu_custom_call.1} parent=43 // pred_fallthru
          _
        %s272 = sand.u32 %s32, 1
        %s273 = scalar_lea.sflag [#allocation3], %s272
        %s274 = sand.u32 %s32, 1
        %s275 = smul.addr %s274, 8
        %s276 = scalar_lea.vmem [#allocation2], %s275
        %p277 = pneg %p45
        %p278 = pneg %p42
        %p279 = pneg %p66
        %p280 = pneg %p63
        %p281 = pneg %p87
        %p282 = pneg %p84
        %p283 = pneg %p108
        %p284 = pneg %p105
        %p285 = pneg %p129
        %p286 = pneg %p126
        %p287 = pneg %p150
        %p288 = pneg %p147
        %p289 = pneg %p176
        %p290 = pneg %p173
        %s291 = sand.u32 %s163, 1
        %s292 = scalar_lea.sflag [#allocation4], %s291
        %s293 = sand.u32 %s163, 1
        %s294 = smul.addr %s293, 8
        %s295 = scalar_lea.vmem [#allocation8], %s294
        %v296 = vld [vmem:[%s259] sm:$0xff]
        %v297 = vld [vmem:[#allocation5] sm:$0xff]
        %v298 = vld [vmem:[#allocation5 + $0x8] sm:$0xff]
        %v299 = vld [vmem:[#allocation5 + $0x10] sm:$0xff]
        %v300 = vld [vmem:[#allocation5 + $0x18] sm:$0xff]
        %vm301 = vcmask 261120
        %v303 = vsel %vm301, %v296, 0
        %305 = vmatprep.subr.mxu0 0.0
        %306 = vmatpush1.msra.mxu0 0.0
        %307 = vmatprep.subr.mxu0 0.0
        %308 = vmatpush1.msra.mxu0 0.0
        %309 = vmatprep.subr.mxu0 0.0
        %310 = vmatpush1.msra.mxu0 0.0
        %311 = vmatprep.subr.mxu0 0.0
        %312 = vmatpush1.msra.mxu0 0.0
        %313 = vmatprep.subr.mxu0 0.0
        %314 = vmatpush1.msra.mxu0 0.0
        %315 = vmatprep.subr.mxu0 0.0
        %316 = vmatpush1.msra.mxu0 0.0
        %317 = vmatprep.subr.mxu0 0.0
        %318 = vmatpush1.msra.mxu0 0.0
        %319 = vmatprep.subr.mxu0 0.0
        %320 = vmatpush1.msra.mxu0 0.0
        %321 = vmatprep.subr.mxu0 0.0
        %322 = vmatpush1.msra.mxu0 0.0
        %323 = vmatprep.subr.mxu0 0.0
        %324 = vmatpush1.msra.mxu0 0.0
        %325 = vmatprep.subr.mxu0 0.0
        %326 = vmatpush1.msra.mxu0 0.0
        %327 = vmatprep.subr.mxu0 0.0
        %328 = vmatpush1.msra.mxu0 0.0
        %329 = vmatprep.subr.mxu0 0.0
        %330 = vmatpush1.msra.mxu0 %v300
        %331 = vmatprep.subr.mxu0 0.0
        %332 = vmatpush1.msra.mxu0 %v299
        %333 = vmatprep.subr.mxu0 0.0
        %334 = vmatpush1.msra.mxu0 %v298
        %335 = vmatprep.subr.mxu0 0.0
        %336 = vmatpush1.msra.mxu0 %v297
        %337 = vmatprep.subr.mxu0 0.0
        %338 = vmatpush2.msra.mxu0 0.0
        %339 = vmatprep.subr.mxu0 0.0
        %340 = vmatpush2.msra.mxu0 0.0
        %341 = vmatprep.subr.mxu0 0.0
        %342 = vmatpush2.msra.mxu0 0.0
        %343 = vmatprep.subr.mxu0 0.0
        %344 = vmatpush2.msra.mxu0 0.0
        %345 = vmatprep.subr.mxu0 0.0
        %346 = vmatpush2.msra.mxu0 0.0
        %347 = vmatprep.subr.mxu0 0.0
        %348 = vmatpush2.msra.mxu0 0.0
        %349 = vmatprep.subr.mxu0 0.0
        %350 = vmatpush2.msra.mxu0 0.0
        %351 = vmatprep.subr.mxu0 0.0
        %352 = vmatpush2.msra.mxu0 0.0
        %353 = vmatprep.subr.mxu0 0.0
        %354 = vmatpush2.msra.mxu0 0.0
        %355 = vmatprep.subr.mxu0 0.0
        %356 = vmatpush2.msra.mxu0 0.0
        %357 = vmatprep.subr.mxu0 0.0
        %358 = vmatpush2.msra.mxu0 0.0
        %359 = vmatprep.subr.mxu0 0.0
        %360 = vmatpush2.msra.mxu0 0.0
        %361 = vmatprep.subr.mxu0 0.0
        %362 = vmatpush2.msra.mxu0 0.0
        %363 = vmatprep.subr.mxu0 0.0
        %364 = vmatpush2.msra.mxu0 0.0
        %365 = vmatprep.subr.mxu0 0.0
        %366 = vmatpush2.msra.mxu0 0.0
        %367 = vmatprep.subr.mxu0 0.0
        %368 = vmatpush2.msra.mxu0 0.0
        %369 = vmatprep.mubr.f32.mxu0 0.0
        %370 = vmatmul.mubr.f32.gmra.mxu0 %v303
        %v371 = vpop.f32.mrf.mxu0
        %v372 = vadd.f32 0.0, %v371
        %v373 = vpop.f32.mrf.mxu0
        %374 = vdwg.mxu0
        %v375 = vsel %vm301, %v372, 0.0
        %v376 = vrot.slane %v375, 4
        %v377 = vadd.f32 %v375, %v376
        %v378 = vrot.slane %v377, 2
        %v379 = vadd.f32 %v377, %v378
        %v380 = vrot.slane %v379, 1
        %v381 = vadd.f32 %v379, %v380
        %v382 = vrcp.pop 8.0
        %v383 = vmul.f32 %v381, %v382
        %v384 = vmul.f32 %v372, %v372
        %v385 = vsel %vm301, %v384, 0.0
        %v386 = vrot.slane %v385, 4
        %v387 = vadd.f32 %v385, %v386
        %v388 = vrot.slane %v387, 2
        %v389 = vadd.f32 %v387, %v388
        %v390 = vrot.slane %v389, 1
        %v391 = vadd.f32 %v389, %v390
        %v392 = vmul.f32 %v391, %v382
        %v393 = vmul.f32 %v383, %v383
        %v394 = vsub.f32 %v392, %v393
        %v395 = vld [vmem:[%s2] sm:$0x1]
        %v396 = vadd.f32 %v394, 1e-05
        %v397 = vrsqrt.pop %v396
        %v398 = vmul.f32 %v395, %v397
        %v399 = vsub.f32 %v372, %v383
        %v400 = vlaneseq
        %v401 = vshrl.u32 %v400, 7
        %v402 = vsub.s32 0, %v401
        %v403 = vrot.slane %v398, %v402
        %v404 = vmul.f32 %v399, %v403
        %v405 = vld [vmem:[%s3] sm:$0x1]
        %v406 = vlaneseq
        %v407 = vshrl.u32 %v406, 7
        %v408 = vsub.s32 0, %v407
        %v409 = vrot.slane %v405, %v408
        %v410 = vadd.f32 %v404, %v409
        %v411 = vxor.u32 %v410, 2147483648
        %v412 = vmul.f32 %v411, 1.442695
        %v413 = vpow.pop %v412
        %v414 = vadd.f32 %v413, 1.0
        %v415 = vrcp.pop %v414
        %v416 = vmul.f32 1.0, %v415
        %v417 = vmul.f32 %v410, %v416
        %s418 = scalar_lea.vmem [#allocation5], 32
        %v419 = vld [vmem:[%s418] sm:$0xff]
        %v420 = vld [vmem:[%s418 + $0x8] sm:$0xff]
        %v421 = vld [vmem:[%s418 + $0x10] sm:$0xff]
        %v422 = vld [vmem:[%s418 + $0x18] sm:$0xff]
        %v424 = vsel %vm301, %v417, 0
        %426 = vmatprep.subr.mxu0 0.0
        %427 = vmatpush1.msra.mxu0 0.0
        %428 = vmatprep.subr.mxu0 0.0
        %429 = vmatpush1.msra.mxu0 0.0
        %430 = vmatprep.subr.mxu0 0.0
        %431 = vmatpush1.msra.mxu0 0.0
        %432 = vmatprep.subr.mxu0 0.0
        %433 = vmatpush1.msra.mxu0 0.0
        %434 = vmatprep.subr.mxu0 0.0
        %435 = vmatpush1.msra.mxu0 0.0
        %436 = vmatprep.subr.mxu0 0.0
        %437 = vmatpush1.msra.mxu0 0.0
        %438 = vmatprep.subr.mxu0 0.0
        %439 = vmatpush1.msra.mxu0 0.0
        %440 = vmatprep.subr.mxu0 0.0
        %441 = vmatpush1.msra.mxu0 0.0
        %442 = vmatprep.subr.mxu0 0.0
        %443 = vmatpush1.msra.mxu0 0.0
        %444 = vmatprep.subr.mxu0 0.0
        %445 = vmatpush1.msra.mxu0 0.0
        %446 = vmatprep.subr.mxu0 0.0
        %447 = vmatpush1.msra.mxu0 0.0
        %448 = vmatprep.subr.mxu0 0.0
        %449 = vmatpush1.msra.mxu0 0.0
        %450 = vmatprep.subr.mxu0 0.0
        %451 = vmatpush1.msra.mxu0 %v422
        %452 = vmatprep.subr.mxu0 0.0
        %453 = vmatpush1.msra.mxu0 %v421
        %454 = vmatprep.subr.mxu0 0.0
        %455 = vmatpush1.msra.mxu0 %v420
        %456 = vmatprep.subr.mxu0 0.0
        %457 = vmatpush1.msra.mxu0 %v419
        %458 = vmatprep.subr.mxu0 0.0
        %459 = vmatpush2.msra.mxu0 0.0
        %460 = vmatprep.subr.mxu0 0.0
        %461 = vmatpush2.msra.mxu0 0.0
        %462 = vmatprep.subr.mxu0 0.0
        %463 = vmatpush2.msra.mxu0 0.0
        %464 = vmatprep.subr.mxu0 0.0
        %465 = vmatpush2.msra.mxu0 0.0
        %466 = vmatprep.subr.mxu0 0.0
        %467 = vmatpush2.msra.mxu0 0.0
        %468 = vmatprep.subr.mxu0 0.0
        %469 = vmatpush2.msra.mxu0 0.0
        %470 = vmatprep.subr.mxu0 0.0
        %471 = vmatpush2.msra.mxu0 0.0
        %472 = vmatprep.subr.mxu0 0.0
        %473 = vmatpush2.msra.mxu0 0.0
        %474 = vmatprep.subr.mxu0 0.0
        %475 = vmatpush2.msra.mxu0 0.0
        %476 = vmatprep.subr.mxu0 0.0
        %477 = vmatpush2.msra.mxu0 0.0
        %478 = vmatprep.subr.mxu0 0.0
        %479 = vmatpush2.msra.mxu0 0.0
        %480 = vmatprep.subr.mxu0 0.0
        %481 = vmatpush2.msra.mxu0 0.0
        %482 = vmatprep.subr.mxu0 0.0
        %483 = vmatpush2.msra.mxu0 0.0
        %484 = vmatprep.subr.mxu0 0.0
        %485 = vmatpush2.msra.mxu0 0.0
        %486 = vmatprep.subr.mxu0 0.0
        %487 = vmatpush2.msra.mxu0 0.0
        %488 = vmatprep.subr.mxu0 0.0
        %489 = vmatpush2.msra.mxu0 0.0
        %490 = vmatprep.mubr.f32.mxu0 0.0
        %491 = vmatmul.mubr.f32.gmra.mxu0 %v424
        %v492 = vpop.f32.mrf.mxu0
        %v493 = vadd.f32 0.0, %v492
        %v494 = vpop.f32.mrf.mxu0
        %495 = vdwg.mxu0
        %v496 = vsel %vm301, %v493, 0.0
        %v497 = vrot.slane %v496, 4
        %v498 = vadd.f32 %v496, %v497
        %v499 = vrot.slane %v498, 2
        %v500 = vadd.f32 %v498, %v499
        %v501 = vrot.slane %v500, 1
        %v502 = vadd.f32 %v500, %v501
        %v503 = vmul.f32 %v502, %v382
        %v504 = vmul.f32 %v493, %v493
        %v505 = vsel %vm301, %v504, 0.0
        %v506 = vrot.slane %v505, 4
        %v507 = vadd.f32 %v505, %v506
        %v508 = vrot.slane %v507, 2
        %v509 = vadd.f32 %v507, %v508
        %v510 = vrot.slane %v509, 1
        %v511 = vadd.f32 %v509, %v510
        %v512 = vmul.f32 %v511, %v382
        %v513 = vmul.f32 %v503, %v503
        %v514 = vsub.f32 %v512, %v513
        %v515 = vld [vmem:[%s2 + $0x1] sm:$0x1]
        %v516 = vadd.f32 %v514, 1e-05
        %v517 = vrsqrt.pop %v516
        %v518 = vmul.f32 %v515, %v517
        %v519 = vsub.f32 %v493, %v503
        %v520 = vlaneseq
        %v521 = vshrl.u32 %v520, 7
        %v522 = vsub.s32 0, %v521
        %v523 = vrot.slane %v518, %v522
        %v524 = vmul.f32 %v519, %v523
        %v525 = vld [vmem:[%s3 + $0x1] sm:$0x1]
        %v526 = vlaneseq
        %v527 = vshrl.u32 %v526, 7
        %v528 = vsub.s32 0, %v527
        %v529 = vrot.slane %v525, %v528
        %v530 = vadd.f32 %v524, %v529
        %v531 = vxor.u32 %v530, 2147483648
        %v532 = vmul.f32 %v531, 1.442695
        %v533 = vpow.pop %v532
        %v534 = vadd.f32 %v533, 1.0
        %v535 = vrcp.pop %v534
        %v536 = vmul.f32 1.0, %v535
        %v537 = vmul.f32 %v530, %v536
        %v538 = vld [vmem:[#allocation7] sm:$0xff]
        %v539 = vld [vmem:[#allocation7 + $0x8] sm:$0xff]
        %v540 = vld [vmem:[#allocation7 + $0x10] sm:$0xff]
        %v541 = vld [vmem:[#allocation7 + $0x18] sm:$0xff]
        %v542 = vld [vmem:[%s5] sm:$0x1]
        %v544 = vlaneseq
        %v545 = vshrl.u32 %v544, 7
        %v546 = vsub.s32 0, %v545
        %v547 = vrot.slane %v542, %v546
        %v550 = vsel %vm301, %v537, 0
        %552 = vmatprep.subr.mxu0 0.0
        %553 = vmatpush1.msra.mxu0 0.0
        %554 = vmatprep.subr.mxu0 0.0
        %555 = vmatpush1.msra.mxu0 0.0
        %556 = vmatprep.subr.mxu0 0.0
        %557 = vmatpush1.msra.mxu0 0.0
        %558 = vmatprep.subr.mxu0 0.0
        %559 = vmatpush1.msra.mxu0 0.0
        %560 = vmatprep.subr.mxu0 0.0
        %561 = vmatpush1.msra.mxu0 0.0
        %562 = vmatprep.subr.mxu0 0.0
        %563 = vmatpush1.msra.mxu0 0.0
        %564 = vmatprep.subr.mxu0 0.0
        %565 = vmatpush1.msra.mxu0 0.0
        %566 = vmatprep.subr.mxu0 0.0
        %567 = vmatpush1.msra.mxu0 0.0
        %568 = vmatprep.subr.mxu0 0.0
        %569 = vmatpush1.msra.mxu0 0.0
        %570 = vmatprep.subr.mxu0 0.0
        %571 = vmatpush1.msra.mxu0 0.0
        %572 = vmatprep.subr.mxu0 0.0
        %573 = vmatpush1.msra.mxu0 0.0
        %574 = vmatprep.subr.mxu0 0.0
        %575 = vmatpush1.msra.mxu0 0.0
        %576 = vmatprep.subr.mxu0 0.0
        %577 = vmatpush1.msra.mxu0 %v541
        %578 = vmatprep.subr.mxu0 0.0
        %579 = vmatpush1.msra.mxu0 %v540
        %580 = vmatprep.subr.mxu0 0.0
        %581 = vmatpush1.msra.mxu0 %v539
        %582 = vmatprep.subr.mxu0 0.0
        %583 = vmatpush1.msra.mxu0 %v538
        %584 = vmatprep.subr.mxu0 0.0
        %585 = vmatpush2.msra.mxu0 0.0
        %586 = vmatprep.subr.mxu0 0.0
        %587 = vmatpush2.msra.mxu0 0.0
        %588 = vmatprep.subr.mxu0 0.0
        %589 = vmatpush2.msra.mxu0 0.0
        %590 = vmatprep.subr.mxu0 0.0
        %591 = vmatpush2.msra.mxu0 0.0
        %592 = vmatprep.subr.mxu0 0.0
        %593 = vmatpush2.msra.mxu0 0.0
        %594 = vmatprep.subr.mxu0 0.0
        %595 = vmatpush2.msra.mxu0 0.0
        %596 = vmatprep.subr.mxu0 0.0
        %597 = vmatpush2.msra.mxu0 0.0
        %598 = vmatprep.subr.mxu0 0.0
        %599 = vmatpush2.msra.mxu0 0.0
        %600 = vmatprep.subr.mxu0 0.0
        %601 = vmatpush2.msra.mxu0 0.0
        %602 = vmatprep.subr.mxu0 0.0
        %603 = vmatpush2.msra.mxu0 0.0
        %604 = vmatprep.subr.mxu0 0.0
        %605 = vmatpush2.msra.mxu0 0.0
        %606 = vmatprep.subr.mxu0 0.0
        %607 = vmatpush2.msra.mxu0 0.0
        %608 = vmatprep.subr.mxu0 0.0
        %609 = vmatpush2.msra.mxu0 0.0
        %610 = vmatprep.subr.mxu0 0.0
        %611 = vmatpush2.msra.mxu0 0.0
        %612 = vmatprep.subr.mxu0 0.0
        %613 = vmatpush2.msra.mxu0 0.0
        %614 = vmatprep.subr.mxu0 0.0
        %615 = vmatpush2.msra.mxu0 0.0
        %616 = vmatprep.mubr.f32.mxu0 0.0
        %617 = vmatmul.mubr.f32.gmra.mxu0 %v550
        %v618 = vpop.f32.mrf.mxu0
        %v619 = vadd.f32 %v547, %v618
        %v620 = vpop.f32.mrf.mxu0
        %621 = vdwg.mxu0
        %622 = vst.msk [vmem:[%s295] sm:$0xff] %vm301, %v619
        %s623 = sand.u32 %s163, 1
        %s624 = scalar_lea.sflag [#allocation4], %s623
        %s625 = sand.u32 %s163, 1
        %s626 = smul.addr %s625, 8
        %s627 = scalar_lea.vmem [#allocation8], %s626
        // Predicated region
        $region57: #{tpu_custom_call.1} parent=43 // pred_check
          %p628 = pneg %p173
        $region58: #{tpu_custom_call.1} parent=43 // pred_check_branch
          %630 = sbr.rel (%p628) target = $region60
        $region59: #{tpu_custom_call.1} parent=43 // pred_region
          %s632 = ssub.s32 128, 128
          %633 = vsyncadd %s624, %s632
          %s634 = smul.addr %s24, 128
          %s635 = scalar_lea.hbm %s6, %s634
          %s637 = sshll.u32 %s627, 4
          %s638 = int_to_ptr.vmem [resolvable:$true] %s637
          %640 = dma.vmem_to_hbm [thread:$0]  %s638, 128, %s635, %s624
        $region60: #{tpu_custom_call.1} parent=43 // pred_fallthru
          _
      $region44: #{tpu_custom_call.1} parent=5 // pred_fallthru
        _
      %p641 = scmp.le.s32.totalorder 2, %s19
      // Predicated region
      $region61: #{tpu_custom_call.1} parent=5 // pred_check
        %p642 = pneg %p641
      $region62: #{tpu_custom_call.1} parent=5 // pred_check_branch
        %644 = sbr.rel (%p642) target = $region64
      $region63: #{tpu_custom_call.1} parent=5 // pred_region
        %s645 = ssub.s32 %s19, 2
        // Predicated region
        $region65: #{tpu_custom_call.1} parent=63 // pred_check
          %p646 = pneg %p179
        $region66: #{tpu_custom_call.1} parent=63 // pred_check_branch
          %648 = sbr.rel (%p646) target = $region68
        $region67: #{tpu_custom_call.1} parent=63 // pred_region
          %s649 = sand.u32 %s164, 1
          %s650 = scalar_lea.sflag [#allocation4], %s649
          %s651 = sand.u32 %s164, 1
          %s652 = smul.addr %s651, 8
          %s653 = scalar_lea.vmem [#allocation8], %s652
          %654 = dma.done %s650, 128
        $region68: #{tpu_custom_call.1} parent=63 // pred_fallthru
          _
      $region64: #{tpu_custom_call.1} parent=5 // pred_fallthru
        _
    $region6: #{tpu_custom_call.1} parent=1 // loop_footer
      %s23 = sadd.s32 1, %s19
    $region7: #{tpu_custom_call.1} parent=1 // loop_footer_branch
      %18 = sbr.rel target = $region3
    $region8: #{tpu_custom_call.1} parent=1 // loop_exit
      _
    %655 = vsyncpa [#allocation3], 1
    %s656 = scalar_lea.sflag [#allocation3], 1
    %657 = vsyncpa %s656, 1
    %658 = vsyncpa [#allocation6], 1
    %659 = vsyncpa [#allocation4], 1
    %s660 = scalar_lea.sflag [#allocation4], 1
    %661 = vsyncpa %s660, 1

</llo_original>
